<compile_context>
chip_gen: v7x
topology: tpu7x:2x2x1
jax: 0.10.0
libtpu: 0.0.40
codegen_flags: <defaults>
</compile_context>

<pallas_src>
import math

import numpy as np
import jax
import jax.numpy as jnp
from jax.experimental import pallas as pl
from jax.experimental.pallas import tpu as pltpu

WIN = 11
PAD = WIN // 2
SIGMA = 1.5
SMOOTH = 1e-5          # monai DiceLoss smooth_nr / smooth_dr defaults
C1 = 0.01 ** 2         # SSIM constants
C2 = 0.03 ** 2
HMAX_ROWS = 256        # target M for the fused H-pass matmul (MXU-sized)


def _gauss1d(ws=WIN, sigma=SIGMA):
    g = [math.exp(-((x - ws // 2) ** 2) / (2.0 * sigma ** 2)) for x in range(ws)]
    s = sum(g)
    return [float(v / s) for v in g]


GAUSS = _gauss1d()     # deterministic gaussian window weights (not learned)


def _gauss_toeplitz(n):
    """Banded (n, n) Toeplitz matrix A with A[i, j] = GAUSS[j - i + PAD] so that
    A @ X (and X @ A, by symmetry of the gaussian) equals the 1-D gaussian conv
    with zero 'same' padding, i.e. F.conv2d(padding=5) along that axis."""
    g = np.asarray(GAUSS, np.float32)
    a = np.zeros((n, n), np.float32)
    for i in range(n):
        for j in range(max(0, i - PAD), min(n, i + PAD + 1)):
            a[i, j] = g[j - i + PAD]
    return a


def _block_diag(a, k):
    n = a.shape[0]
    out = np.zeros((k * n, k * n), np.float32)
    for i in range(k):
        out[i * n:(i + 1) * n, i * n:(i + 1) * n] = a
    return out


def _vmem_budget_bytes():
    # Per-generation scoped-VMEM budget: ~96 MiB on 128 MiB parts (v5e/v6e),
    # 48 MiB otherwise (safe inside v7x's 64 MiB physical VMEM).
    try:
        cap = int(pltpu.get_tpu_info().vmem_capacity_bytes)
    except Exception:
        cap = 0
    if cap >= 120 * 1024 * 1024:
        return 96 * 1024 * 1024
    return 48 * 1024 * 1024


def _make_myloss_kernel(gb, h, lw, rep, hchunks):
    """One grid step processes `gb` lane-packed groups, each (h, lw) holding
    L = lw // w images side by side along lanes.  Emits per-group lane partials
    [inter, pp+gg, ssim_map, bce] of shape (4, gb, lw)."""
    n = gb * h

    def kernel(awl_ref, ahk_ref, x_ref, g_ref, out_ref, slab_ref):
        x = x_ref[...].reshape(n, lw).astype(jnp.float32)   # logits
        g = g_ref[...].reshape(n, lw).astype(jnp.float32)   # targets

        p = jax.nn.sigmoid(x)
        pp = p * p
        gg = g * g
        pg = p * g

        # Build the field-major stacked slab directly in VMEM scratch
        # (avoids a jnp.concatenate copy through the store port).
        slab_ref[0 * n:1 * n, :] = p
        slab_ref[1 * n:2 * n, :] = g
        slab_ref[2 * n:3 * n, :] = pp
        slab_ref[3 * n:4 * n, :] = gg
        slab_ref[4 * n:5 * n, :] = pg

        # BCE directly from logits: max(x,0) - x*g + log(1 + exp(-|x|))
        bce = (jnp.maximum(x, 0.0) - x * g
               + jnp.log(1.0 + jnp.exp(-jnp.abs(x))))

        # ---- separable gaussian conv on the MXU ----
        # W-pass: one batched matmul over all 5 fields * gb groups.
        y = jnp.dot(slab_ref[...], awl_ref[...],
                    preferred_element_type=jnp.float32)          # (5n, lw)
        # H-pass: fused via a block-diagonal Toeplitz; usually a single matmul.
        if hchunks == 1:
            conv = jnp.dot(ahk_ref[...], y,
                           preferred_element_type=jnp.float32)   # (5n, lw)
        else:
            rh = rep * h
            conv = jnp.concatenate(
                [jnp.dot(ahk_ref[...], y[i * rh:(i + 1) * rh, :],
                         preferred_element_type=jnp.float32)
                 for i in range(hchunks)], axis=0)

        mu1 = conv[0 * n:1 * n]
        mu2 = conv[1 * n:2 * n]
        e11 = conv[2 * n:3 * n]
        e22 = conv[3 * n:4 * n]
        e12 = conv[4 * n:5 * n]

        mu1s = mu1 * mu1
        mu2s = mu2 * mu2
        mu12 = mu1 * mu2
        num = (2.0 * mu12 + C1) * (2.0 * (e12 - mu12) + C2)
        den = (mu1s + mu2s + C1) * ((e11 - mu1s) + (e22 - mu2s) + C2)
        r = pl.reciprocal(den, approx=True)
        r = r * (2.0 - den * r)                 # one Newton step (~f32 accurate)
        ssim_map = num * r

        # Per-group sublane partial sums only; lane reduce is deferred to JAX.
        def rowsum(a):                           # (gb*h, lw) -> (gb, lw)
            rows = [jnp.sum(a[i * h:(i + 1) * h, :], axis=0, keepdims=True)
                    for i in range(gb)]
            return rows[0] if gb == 1 else jnp.concatenate(rows, axis=0)

        out_ref[0] = jnp.concatenate(
            [rowsum(pg)[None], rowsum(pp + gg)[None],
             rowsum(ssim_map)[None], rowsum(bce)[None]], axis=0)  # (4, gb, lw)

    return kernel


def myloss_pallas(pred, gt):
    """pred: logits NCHW, gt: targets in [0,1] NCHW. Returns scalar loss."""
    n, c, h, w = pred.shape
    nc = n * c
    nel = nc * h * w

    # ---- lane packing: pack L images along lanes when W < 128 ----
    L = max(1, 128 // w) if w < 128 else 1
    L = min(L, nc)
    lw = L * w
    nG = -(-nc // L)                       # lane-packed groups

    # ---- per-generation VMEM budget, incl. constants + double buffers ----
    budget = _vmem_budget_bytes()
    in_b = pred.dtype.itemsize
    const_bytes = 2 * 4 * (lw * lw) + 2 * 4 * (max(h, HMAX_ROWS) ** 2)
    per_group = h * lw * (36 * 4 + 4 * in_b) + 2 * 4 * 4 * lw
    avail = max(budget - const_bytes, per_group)
    gb = int(max(1, min(avail // per_group, nG, 32)))
    # keep >= ~4 grid steps so v7x's two TensorCores both get work and the
    # auto-pipeline has steps to overlap
    gb = min(gb, max(1, -(-nG // 4)))
    # prefer a divisor of nG (avoids an extra padding pass over HBM)
    for cand in range(gb, max(gb // 2, 1) - 1, -1):
        if nG % cand == 0:
            gb = cand
            break
    num_steps = -(-nG // gb)

    # ---- fused H-pass: rep = #A_h blocks per matmul (rep | 5*gb, rep*h<=256)
    rep = 1
    for d in range(min(5 * gb, max(1, HMAX_ROWS // max(h, 1))), 0, -1):
        if (5 * gb) % d == 0 and d * h <= HMAX_ROWS:
            rep = d
            break
    hchunks = (5 * gb) // rep

    total_groups = num_steps * gb
    total_imgs = total_groups * L

    pred_r = pred.reshape(nc, h, w)        # keep HBM dtype; cast in-kernel
    gt_r = gt.reshape(nc, h, w)
    if total_imgs != nc:                   # padded images are dropped in JAX
        cfg = ((0, total_imgs - nc), (0, 0), (0, 0))
        pred_r = jnp.pad(pred_r, cfg)
        gt_r = jnp.pad(gt_r, cfg)

    def pack(a):                           # (G*L, h, w) -> (G, h, L*w)
        return (a.reshape(total_groups, L, h, w)
                 .transpose(0, 2, 1, 3)
                 .reshape(total_groups, h, lw))

    xp = pack(pred_r)
    gp = pack(gt_r)

    ah = _gauss_toeplitz(h)
    aw = _gauss_toeplitz(w)
    awl = jnp.asarray(_block_diag(aw, L))        # (lw, lw)    W-pass constant
    ahk = jnp.asarray(_block_diag(ah, rep))      # (rep*h,)^2  H-pass constant

    parts = pl.pallas_call(
        _make_myloss_kernel(gb, h, lw, rep, hchunks),
        out_shape=jax.ShapeDtypeStruct((num_steps, 4, gb, lw), jnp.float32),
        grid_spec=pltpu.PrefetchScalarGridSpec(
            num_scalar_prefetch=0,
            grid=(num_steps,),
            in_specs=[
                pl.BlockSpec((lw, lw), lambda i: (0, 0)),          # A_w blkdiag
                pl.BlockSpec((rep * h, rep * h), lambda i: (0, 0)),  # A_h blkdiag
                pl.BlockSpec((gb, h, lw), lambda i: (i, 0, 0)),
                pl.BlockSpec((gb, h, lw), lambda i: (i, 0, 0)),
            ],
            out_specs=pl.BlockSpec((1, 4, gb, lw), lambda i: (i, 0, 0, 0)),
            scratch_shapes=[pltpu.VMEM((5 * gb * h, lw), jnp.float32)],
        ),
        compiler_params=pltpu.CompilerParams(
            dimension_semantics=("parallel",),   # steps independent (2-TC v7x)
            vmem_limit_bytes=int(budget),
        ),
    )(awl, ahk, xp, gp)

    # ---- tiny JAX epilogue: lane reduce, per-image dice (exact), means ----
    q = parts.transpose(0, 2, 1, 3).reshape(total_groups, 4, L, w).sum(-1)
    q = q.transpose(0, 2, 1).reshape(total_groups * L, 4)[:nc]
    inter, denom, ssim_s, bce_s = q[:, 0], q[:, 1], q[:, 2], q[:, 3]
    dice = jnp.mean(1.0 - (2.0 * inter + SMOOTH) / (denom + SMOOTH))
    ssim = jnp.sum(ssim_s) / float(nel)
    bce = jnp.sum(bce_s) / float(nel)
    return dice + (1.0 - ssim) + bce


def _myloss_ref(pred, gt):
    # pure-JAX reference (mirrors the PyTorch module semantics) for validation
    n, c, h, w = pred.shape
    p = jax.nn.sigmoid(pred)
    inter = jnp.sum(p * gt, axis=(2, 3))
    denom = jnp.sum(p * p, axis=(2, 3)) + jnp.sum(gt * gt, axis=(2, 3))
    dice = jnp.mean(1.0 - (2.0 * inter + SMOOTH) / (denom + SMOOTH))
    bce = jnp.mean(-(gt * jnp.log(p) + (1.0 - gt) * jnp.log(1.0 - p)))
    g1 = jnp.array(GAUSS, jnp.float32)
    w2 = jnp.outer(g1, g1)
    wker = jnp.broadcast_to(w2, (c, 1, WIN, WIN))

    def conv(x):
        return jax.lax.conv_general_dilated(
            x, wker, (1, 1), ((PAD, PAD), (PAD, PAD)),
            dimension_numbers=("NCHW", "OIHW", "NCHW"), feature_group_count=c)

    mu1, mu2 = conv(p), conv(gt)
    s1 = conv(p * p) - mu1 ** 2
    s2 = conv(gt * gt) - mu2 ** 2
    s12 = conv(p * gt) - mu1 * mu2
    ssim_map = ((2 * mu1 * mu2 + C1) * (2 * s12 + C2)) / (
        (mu1 ** 2 + mu2 ** 2 + C1) * (s1 + s2 + C2))
    return dice + (1.0 - jnp.mean(ssim_map)) + bce


if __name__ == "__main__":
    key = jax.random.PRNGKey(0)
    k1, k2 = jax.random.split(key)
    pred = jax.random.normal(k1, (2, 4, 16, 16), jnp.float32)           # logits
    gt = jax.random.bernoulli(k2, 0.5, (2, 4, 16, 16)).astype(jnp.float32)

    loss = myloss_pallas(pred, gt)
    jax.block_until_ready(loss)

    ref = _myloss_ref(pred, gt)
    assert abs(float(loss) - float(ref)) < 2e-3, (float(loss), float(ref))
    print("KERNEL_OK")
</pallas_src>

<mosaic_0001>
module attributes {stable_mosaic.version = 11 : i64} {
  func.func @kernel(%arg0: i32, %arg1: memref<128x128xf32, #tpu.memory_space<vmem>>, %arg2: memref<80x80xf32, #tpu.memory_space<vmem>>, %arg3: memref<1x16x128xf32, #tpu.memory_space<vmem>>, %arg4: memref<1x16x128xf32, #tpu.memory_space<vmem>>, %arg5: memref<1x4x1x128xf32, #tpu.memory_space<vmem>>, %arg6: memref<80x128xf32, #tpu.memory_space<vmem>>) attributes {dimension_semantics = [#tpu.dimension_semantics<parallel>], iteration_bounds = array<i64: 1>, scalar_prefetch = 0 : i64, scratch_operands = 1 : i64, tpu.core_type = #tpu.core_type<tc>, window_params = [{pipeline_mode = #tpu.pipeline_mode<synchronous>, transform_indices = @transform_0, window_bounds = array<i64: 128, 128>}, {pipeline_mode = #tpu.pipeline_mode<synchronous>, transform_indices = @transform_1, window_bounds = array<i64: 80, 80>}, {transform_indices = @transform_2, window_bounds = array<i64: 1, 16, 128>}, {transform_indices = @transform_3, window_bounds = array<i64: 1, 16, 128>}, {transform_indices = @transform_4, window_bounds = array<i64: 1, 4, 1, 128>}]} {
    %c0 = arith.constant 0 : index
    %c0_0 = arith.constant 0 : index
    %c0_1 = arith.constant 0 : index
    %0 = vector.load %arg3[%c0, %c0_0, %c0_1] : memref<1x16x128xf32, #tpu.memory_space<vmem>>, vector<1x16x128xf32>
    %1 = vector.shape_cast %0 : vector<1x16x128xf32> to vector<16x128xf32>
    %c0_2 = arith.constant 0 : index
    %c0_3 = arith.constant 0 : index
    %c0_4 = arith.constant 0 : index
    %2 = vector.load %arg4[%c0_2, %c0_3, %c0_4] : memref<1x16x128xf32, #tpu.memory_space<vmem>>, vector<1x16x128xf32>
    %3 = vector.shape_cast %2 : vector<1x16x128xf32> to vector<16x128xf32>
    %4 = arith.negf %1 : vector<16x128xf32>
    %5 = math.exp %4 : vector<16x128xf32>
    %cst = arith.constant 1.000000e+00 : f32
    %6 = vector.broadcast %cst : f32 to vector<16x128xf32>
    %7 = arith.addf %6, %5 : vector<16x128xf32>
    %8 = arith.divf %6, %7 : vector<16x128xf32>
    %9 = arith.mulf %8, %8 : vector<16x128xf32>
    %10 = arith.mulf %3, %3 : vector<16x128xf32>
    %11 = arith.mulf %8, %3 : vector<16x128xf32>
    %c0_5 = arith.constant 0 : index
    %c0_6 = arith.constant 0 : index
    %12 = vector.load %arg6[%c0_5, %c0_6] : memref<80x128xf32, #tpu.memory_space<vmem>>, vector<16x128xf32>
    tpu.vector_store %arg6[%c0_5, %c0_6], %8 {strides = array<i32>} : memref<80x128xf32, #tpu.memory_space<vmem>>, vector<16x128xf32>,
    %c16 = arith.constant 16 : index
    %c0_7 = arith.constant 0 : index
    %13 = vector.load %arg6[%c16, %c0_7] : memref<80x128xf32, #tpu.memory_space<vmem>>, vector<16x128xf32>
    tpu.vector_store %arg6[%c16, %c0_7], %3 {strides = array<i32>} : memref<80x128xf32, #tpu.memory_space<vmem>>, vector<16x128xf32>,
    %c32 = arith.constant 32 : index
    %c0_8 = arith.constant 0 : index
    %14 = vector.load %arg6[%c32, %c0_8] : memref<80x128xf32, #tpu.memory_space<vmem>>, vector<16x128xf32>
    tpu.vector_store %arg6[%c32, %c0_8], %9 {strides = array<i32>} : memref<80x128xf32, #tpu.memory_space<vmem>>, vector<16x128xf32>,
    %c48 = arith.constant 48 : index
    %c0_9 = arith.constant 0 : index
    %15 = vector.load %arg6[%c48, %c0_9] : memref<80x128xf32, #tpu.memory_space<vmem>>, vector<16x128xf32>
    tpu.vector_store %arg6[%c48, %c0_9], %10 {strides = array<i32>} : memref<80x128xf32, #tpu.memory_space<vmem>>, vector<16x128xf32>,
    %c64 = arith.constant 64 : index
    %c0_10 = arith.constant 0 : index
    %16 = vector.load %arg6[%c64, %c0_10] : memref<80x128xf32, #tpu.memory_space<vmem>>, vector<16x128xf32>
    tpu.vector_store %arg6[%c64, %c0_10], %11 {strides = array<i32>} : memref<80x128xf32, #tpu.memory_space<vmem>>, vector<16x128xf32>,
    %cst_11 = arith.constant 0.000000e+00 : f32
    %17 = vector.broadcast %cst_11 : f32 to vector<16x128xf32>
    %18 = arith.maximumf %1, %17 : vector<16x128xf32>
    %19 = arith.mulf %1, %3 : vector<16x128xf32>
    %20 = arith.subf %18, %19 : vector<16x128xf32>
    %21 = math.absf %1 : vector<16x128xf32>
    %cst_12 = arith.constant 0.000000e+00 : f32
    %22 = vector.broadcast %cst_12 : f32 to vector<16x128xf32>
    %23 = arith.subf %22, %21 : vector<16x128xf32>
    %24 = math.exp %23 : vector<16x128xf32>
    %cst_13 = arith.constant 1.000000e+00 : f32
    %25 = vector.broadcast %cst_13 : f32 to vector<16x128xf32>
    %26 = arith.addf %25, %24 : vector<16x128xf32>
    %27 = math.log %26 : vector<16x128xf32>
    %28 = arith.addf %20, %27 : vector<16x128xf32>
    %c0_14 = arith.constant 0 : index
    %c0_15 = arith.constant 0 : index
    %29 = vector.load %arg6[%c0_14, %c0_15] : memref<80x128xf32, #tpu.memory_space<vmem>>, vector<80x128xf32>
    %c0_16 = arith.constant 0 : index
    %c0_17 = arith.constant 0 : index
    %30 = vector.load %arg1[%c0_16, %c0_17] : memref<128x128xf32, #tpu.memory_space<vmem>>, vector<128x128xf32>
    %cst_18 = arith.constant dense<0.000000e+00> : vector<80x128xf32>
    %31 = tpu.matmul %29, %30, %cst_18 {dimension_numbers = #tpu.dot_dimension_numbers<[1], [0], [0], [1], [0, 0, 1, 1], [], []>} : vector<80x128xf32>, vector<128x128xf32>, vector<80x128xf32> -> vector<80x128xf32>
    %c0_19 = arith.constant 0 : index
    %c0_20 = arith.constant 0 : index
    %32 = vector.load %arg2[%c0_19, %c0_20] : memref<80x80xf32, #tpu.memory_space<vmem>>, vector<80x80xf32>
    %cst_21 = arith.constant dense<0.000000e+00> : vector<80x128xf32>
    %33 = tpu.matmul %32, %31, %cst_21 {dimension_numbers = #tpu.dot_dimension_numbers<[1], [0], [0], [1], [0, 0, 1, 1], [], []>} : vector<80x80xf32>, vector<80x128xf32>, vector<80x128xf32> -> vector<80x128xf32>
    %34 = vector.extract_strided_slice %33 {offsets = [0, 0], sizes = [16, 128], strides = [1, 1]} : vector<80x128xf32> to vector<16x128xf32>
    %35 = vector.extract_strided_slice %33 {offsets = [16, 0], sizes = [16, 128], strides = [1, 1]} : vector<80x128xf32> to vector<16x128xf32>
    %36 = vector.extract_strided_slice %33 {offsets = [32, 0], sizes = [16, 128], strides = [1, 1]} : vector<80x128xf32> to vector<16x128xf32>
    %37 = vector.extract_strided_slice %33 {offsets = [48, 0], sizes = [16, 128], strides = [1, 1]} : vector<80x128xf32> to vector<16x128xf32>
    %38 = vector.extract_strided_slice %33 {offsets = [64, 0], sizes = [16, 128], strides = [1, 1]} : vector<80x128xf32> to vector<16x128xf32>
    %39 = arith.mulf %34, %34 : vector<16x128xf32>
    %40 = arith.mulf %35, %35 : vector<16x128xf32>
    %41 = arith.mulf %34, %35 : vector<16x128xf32>
    %cst_22 = arith.constant 2.000000e+00 : f32
    %42 = vector.broadcast %cst_22 : f32 to vector<16x128xf32>
    %43 = arith.mulf %42, %41 : vector<16x128xf32>
    %cst_23 = arith.constant 9.99999974E-5 : f32
    %44 = vector.broadcast %cst_23 : f32 to vector<16x128xf32>
    %45 = arith.addf %43, %44 : vector<16x128xf32>
    %46 = arith.subf %38, %41 : vector<16x128xf32>
    %cst_24 = arith.constant 2.000000e+00 : f32
    %47 = vector.broadcast %cst_24 : f32 to vector<16x128xf32>
    %48 = arith.mulf %47, %46 : vector<16x128xf32>
    %cst_25 = arith.constant 8.99999984E-4 : f32
    %49 = vector.broadcast %cst_25 : f32 to vector<16x128xf32>
    %50 = arith.addf %48, %49 : vector<16x128xf32>
    %51 = arith.mulf %45, %50 : vector<16x128xf32>
    %52 = arith.addf %39, %40 : vector<16x128xf32>
    %cst_26 = arith.constant 9.99999974E-5 : f32
    %53 = vector.broadcast %cst_26 : f32 to vector<16x128xf32>
    %54 = arith.addf %52, %53 : vector<16x128xf32>
    %55 = arith.subf %36, %39 : vector<16x128xf32>
    %56 = arith.subf %37, %40 : vector<16x128xf32>
    %57 = arith.addf %55, %56 : vector<16x128xf32>
    %cst_27 = arith.constant 8.99999984E-4 : f32
    %58 = vector.broadcast %cst_27 : f32 to vector<16x128xf32>
    %59 = arith.addf %57, %58 : vector<16x128xf32>
    %60 = arith.mulf %54, %59 : vector<16x128xf32>
    %61 = tpu.reciprocal %60 {approx = true} : vector<16x128xf32> -> vector<16x128xf32>
    %62 = arith.mulf %60, %61 : vector<16x128xf32>
    %cst_28 = arith.constant 2.000000e+00 : f32
    %63 = vector.broadcast %cst_28 : f32 to vector<16x128xf32>
    %64 = arith.subf %63, %62 : vector<16x128xf32>
    %65 = arith.mulf %61, %64 : vector<16x128xf32>
    %66 = arith.mulf %51, %65 : vector<16x128xf32>
    %cst_29 = arith.constant dense<0.000000e+00> : vector<128xf32>
    %67 = vector.multi_reduction <add>, %11, %cst_29 [0] : vector<16x128xf32> to vector<128xf32>
    %68 = vector.shape_cast %67 : vector<128xf32> to vector<1x128xf32>
    %69 = vector.shape_cast %68 : vector<1x128xf32> to vector<1x1x128xf32>
    %70 = arith.addf %9, %10 : vector<16x128xf32>
    %cst_30 = arith.constant dense<0.000000e+00> : vector<128xf32>
    %71 = vector.multi_reduction <add>, %70, %cst_30 [0] : vector<16x128xf32> to vector<128xf32>
    %72 = vector.shape_cast %71 : vector<128xf32> to vector<1x128xf32>
    %73 = vector.shape_cast %72 : vector<1x128xf32> to vector<1x1x128xf32>
    %cst_31 = arith.constant dense<0.000000e+00> : vector<128xf32>
    %74 = vector.multi_reduction <add>, %66, %cst_31 [0] : vector<16x128xf32> to vector<128xf32>
    %75 = vector.shape_cast %74 : vector<128xf32> to vector<1x128xf32>
    %76 = vector.shape_cast %75 : vector<1x128xf32> to vector<1x1x128xf32>
    %cst_32 = arith.constant dense<0.000000e+00> : vector<128xf32>
    %77 = vector.multi_reduction <add>, %28, %cst_32 [0] : vector<16x128xf32> to vector<128xf32>
    %78 = vector.shape_cast %77 : vector<128xf32> to vector<1x128xf32>
    %79 = vector.shape_cast %78 : vector<1x128xf32> to vector<1x1x128xf32>
    %80 = tpu.concatenate %69, %73, %76, %79 in 0 : vector<1x1x128xf32>, vector<1x1x128xf32>, vector<1x1x128xf32>, vector<1x1x128xf32> -> vector<4x1x128xf32>
    %c0_33 = arith.constant 0 : index
    %c0_34 = arith.constant 0 : index
    %c0_35 = arith.constant 0 : index
    %c0_36 = arith.constant 0 : index
    %81 = vector.load %arg5[%c0_33, %c0_34, %c0_35, %c0_36] : memref<1x4x1x128xf32, #tpu.memory_space<vmem>>, vector<1x4x1x128xf32>
    %82 = vector.shape_cast %81 : vector<1x4x1x128xf32> to vector<4x1x128xf32>
    %83 = vector.shape_cast %80 : vector<4x1x128xf32> to vector<1x4x1x128xf32>
    tpu.vector_store %arg5[%c0_33, %c0_34, %c0_35, %c0_36], %83 {strides = array<i32>} : memref<1x4x1x128xf32, #tpu.memory_space<vmem>>, vector<1x4x1x128xf32>,
    return
  }
  func.func @transform_0(%arg0: i32) -> (i32, i32) {
    %c0_i32 = arith.constant 0 : i32
    %c0_i32_0 = arith.constant 0 : i32
    %c0_i32_1 = arith.constant 0 : i32
    return %c0_i32, %c0_i32_0 : i32, i32
  }
  func.func @transform_1(%arg0: i32) -> (i32, i32) {
    %c0_i32 = arith.constant 0 : i32
    %c0_i32_0 = arith.constant 0 : i32
    %c0_i32_1 = arith.constant 0 : i32
    return %c0_i32, %c0_i32_0 : i32, i32
  }
  func.func @transform_2(%arg0: i32) -> (i32, i32, i32) {
    %c0_i32 = arith.constant 0 : i32
    %c0_i32_0 = arith.constant 0 : i32
    %c0_i32_1 = arith.constant 0 : i32
    return %arg0, %c0_i32, %c0_i32_0 : i32, i32, i32
  }
  func.func @transform_3(%arg0: i32) -> (i32, i32, i32) {
    %c0_i32 = arith.constant 0 : i32
    %c0_i32_0 = arith.constant 0 : i32
    %c0_i32_1 = arith.constant 0 : i32
    return %arg0, %c0_i32, %c0_i32_0 : i32, i32, i32
  }
  func.func @transform_4(%arg0: i32) -> (i32, i32, i32, i32) {
    %c0_i32 = arith.constant 0 : i32
    %c0_i32_0 = arith.constant 0 : i32
    %c0_i32_1 = arith.constant 0 : i32
    %c0_i32_2 = arith.constant 0 : i32
    return %arg0, %c0_i32, %c0_i32_0, %c0_i32_1 : i32, i32, i32, i32
  }
}

</mosaic_0001>

<llo_original>
// kernel: tpu_custom_call.1
$region0: #{tpu_custom_call.1}
  #allocation0 [shape = 'u32[]', space=smem, size = 0x4, offset = 0x4, fixed_abs, tag = 'smem constant byte address 0x4 - core index']
  #allocation1 [shape = 'u32[144,128]{1,0:T(1,128)}', space=vmem, size = 0x12000, scoped, tag = 'internal scratch']
  #allocation2 [shape = 'f32[80,128]{1,0:T(8,128)}', space=vmem, size = 0xa000, scoped, tag = 'scratch operand']
  %s0 = inlined_call_operand.hbm [shape: f32[128,128], index: 0, kind: input, shape index: {}]
  %s1 = inlined_call_operand.hbm [shape: f32[80,80], index: 1, kind: input, shape index: {}]
  %s2 = inlined_call_operand.hbm [shape: f32[1,16,128], index: 2, kind: input, shape index: {}]
  %s3 = inlined_call_operand.hbm [shape: f32[1,16,128], index: 3, kind: input, shape index: {}]
  %s4 = inlined_call_operand.hbm [shape: f32[1,4,1,128], index: 4, kind: output, shape index: {}]
  %s5 = sld [smem:[#allocation0]]
  $region42: #{tpu_custom_call.1} parent=0
    _
  %s7 = ssub.s32 1, %s5
  %s8 = scalar_select 0, %s7, %s5
  $region1: #{tpu_custom_call.1} parent=0
    #allocation3 [shape = 'u8[65536]{0}', space=vmem, size = 0x10000, scoped, tag = 'input window, operand 0, single buffered']
    #allocation4 [shape = 's32[1]{0}', space=sflag, size = 0x4, scoped, tag = 'scoped memory for tpu_custom_call.1']
    #allocation5 [shape = 's32[1]{0}', space=sflag, size = 0x4, scoped, tag = 'scoped memory for tpu_custom_call.1']
    #allocation6 [shape = 'u8[40960]{0}', space=vmem, size = 0xa000, scoped, tag = 'input window, operand 1, single buffered']
    #allocation7 [shape = 's32[1]{0}', space=sflag, size = 0x4, scoped, tag = 'scoped memory for tpu_custom_call.1']
    #allocation8 [shape = 'u8[8192]{0}', space=vmem, size = 0x2000, scoped, tag = 'input window, operand 2, single buffered']
    #allocation9 [shape = 'u8[8192]{0}', space=vmem, size = 0x2000, scoped, tag = 'input window, operand 3, single buffered']
    #allocation10 [shape = 's32[1]{0}', space=sflag, size = 0x4, scoped, tag = 'scoped memory for tpu_custom_call.1']
    #allocation11 [shape = 'u8[2048]{0}', space=vmem, size = 0x800, scoped, tag = 'output window, operand 0, single buffered']
    %9 = vsyncpa [#allocation4], 0
    %10 = vsyncpa [#allocation7], 0
    %11 = vsyncpa [#allocation10], 0
    %12 = vsyncpa [#allocation5], 0
    // Predicated region
    $region2: #{tpu_custom_call.1} parent=1 // pred_check
      _
    $region3: #{tpu_custom_call.1} parent=1 // pred_check_branch
      %14 = sbr.rel (0) target = $region5
    $region4: #{tpu_custom_call.1} parent=1 // pred_region
      %s16 = ssub.s32 2048, 2048
      %17 = vsyncadd [#allocation4], %s16
      %s18 = sshll.u32 [#allocation3], 4
      %s19 = int_to_ptr.vmem [resolvable:$true] %s18
      %24 = dma.hbm_to_vmem [thread:$0]  %s0, 2048, %s19, [#allocation4], 128, 128, 8
    $region5: #{tpu_custom_call.1} parent=1 // pred_fallthru
      _
    // Predicated region
    $region6: #{tpu_custom_call.1} parent=1 // pred_check
      _
    $region7: #{tpu_custom_call.1} parent=1 // pred_check_branch
      %26 = sbr.rel (0) target = $region9
    $region8: #{tpu_custom_call.1} parent=1 // pred_region
      %s28 = ssub.s32 1280, 1280
      %29 = vsyncadd [#allocation7], %s28
      %s30 = sshll.u32 [#allocation6], 4
      %s31 = int_to_ptr.vmem [resolvable:$true] %s30
      %36 = dma.hbm_to_vmem [thread:$0]  %s1, 1280, %s31, [#allocation7], 128, 128, 8
    $region9: #{tpu_custom_call.1} parent=1 // pred_fallthru
      _
    // Predicated region
    $region10: #{tpu_custom_call.1} parent=1 // pred_check
      _
    $region11: #{tpu_custom_call.1} parent=1 // pred_check_branch
      %38 = sbr.rel (0) target = $region13
    $region12: #{tpu_custom_call.1} parent=1 // pred_region
      %s40 = ssub.s32 256, 256
      %41 = vsyncadd [#allocation7], %s40
      %s42 = sshll.u32 [#allocation8], 4
      %s43 = int_to_ptr.vmem [resolvable:$true] %s42
      %48 = dma.hbm_to_vmem [thread:$0]  %s2, 256, %s43, [#allocation7], 128, 128, 8
    $region13: #{tpu_custom_call.1} parent=1 // pred_fallthru
      _
    // Predicated region
    $region14: #{tpu_custom_call.1} parent=1 // pred_check
      _
    $region15: #{tpu_custom_call.1} parent=1 // pred_check_branch
      %50 = sbr.rel (0) target = $region17
    $region16: #{tpu_custom_call.1} parent=1 // pred_region
      %s52 = ssub.s32 256, 256
      %53 = vsyncadd [#allocation10], %s52
      %s54 = sshll.u32 [#allocation9], 4
      %s55 = int_to_ptr.vmem [resolvable:$true] %s54
      %60 = dma.hbm_to_vmem [thread:$0]  %s3, 256, %s55, [#allocation10], 128, 128, 8
    $region17: #{tpu_custom_call.1} parent=1 // pred_fallthru
      _
    // Predicated region
    $region18: #{tpu_custom_call.1} parent=1 // pred_check
      _
    $region19: #{tpu_custom_call.1} parent=1 // pred_check_branch
      %62 = sbr.rel (0) target = $region21
    $region20: #{tpu_custom_call.1} parent=1 // pred_region
      %63 = dma.done [#allocation4], 2048
    $region21: #{tpu_custom_call.1} parent=1 // pred_fallthru
      _
    // Predicated region
    $region22: #{tpu_custom_call.1} parent=1 // pred_check
      _
    $region23: #{tpu_custom_call.1} parent=1 // pred_check_branch
      %65 = sbr.rel (0) target = $region25
    $region24: #{tpu_custom_call.1} parent=1 // pred_region
      %66 = dma.done [#allocation7], 1280
    $region25: #{tpu_custom_call.1} parent=1 // pred_fallthru
      _
    // Predicated region
    $region26: #{tpu_custom_call.1} parent=1 // pred_check
      _
    $region27: #{tpu_custom_call.1} parent=1 // pred_check_branch
      %68 = sbr.rel (0) target = $region29
    $region28: #{tpu_custom_call.1} parent=1 // pred_region
      %69 = dma.done [#allocation7], 256
    $region29: #{tpu_custom_call.1} parent=1 // pred_fallthru
      _
    // Predicated region
    $region30: #{tpu_custom_call.1} parent=1 // pred_check
      _
    $region31: #{tpu_custom_call.1} parent=1 // pred_check_branch
      %71 = sbr.rel (0) target = $region33
    $region32: #{tpu_custom_call.1} parent=1 // pred_region
      %72 = dma.done [#allocation10], 256
    $region33: #{tpu_custom_call.1} parent=1 // pred_fallthru
      _
    %v73 = vld [vmem:[#allocation8] sm:$0xff]
    %v74 = vld [vmem:[#allocation8 + $0x8] sm:$0xff]
    %v75 = vld [vmem:[#allocation9] sm:$0xff]
    %v76 = vld [vmem:[#allocation9 + $0x8] sm:$0xff]
    %v77 = vxor.u32 %v73, 2147483648
    %v78 = vxor.u32 %v74, 2147483648
    %v79 = vmul.f32 %v77, 1.442695
    %v80 = vpow.pop %v79
    %v81 = vmul.f32 %v78, 1.442695
    %v82 = vpow.pop %v81
    %v83 = vadd.f32 %v80, 1.0
    %v84 = vadd.f32 %v82, 1.0
    %v85 = vrcp.pop %v83
    %v86 = vmul.f32 1.0, %v85
    %v87 = vrcp.pop %v84
    %v88 = vmul.f32 1.0, %v87
    %v89 = vmul.f32 %v86, %v86
    %v90 = vmul.f32 %v88, %v88
    %v91 = vmul.f32 %v75, %v75
    %v92 = vmul.f32 %v76, %v76
    %v93 = vmul.f32 %v86, %v75
    %v94 = vmul.f32 %v88, %v76
    %95 = vst [vmem:[#allocation2] sm:$0xff] %v86
    %96 = vst [vmem:[#allocation2 + $0x8] sm:$0xff] %v88
    %97 = vst [vmem:[#allocation2 + $0x10] sm:$0xff] %v75
    %98 = vst [vmem:[#allocation2 + $0x18] sm:$0xff] %v76
    %99 = vst [vmem:[#allocation2 + $0x20] sm:$0xff] %v89
    %100 = vst [vmem:[#allocation2 + $0x28] sm:$0xff] %v90
    %101 = vst [vmem:[#allocation2 + $0x30] sm:$0xff] %v91
    %102 = vst [vmem:[#allocation2 + $0x38] sm:$0xff] %v92
    %103 = vst [vmem:[#allocation2 + $0x40] sm:$0xff] %v93
    %104 = vst [vmem:[#allocation2 + $0x48] sm:$0xff] %v94
    %v105 = vmax.f32 %v73, 0.0
    %v106 = vmax.f32 %v74, 0.0
    %v107 = vmul.f32 %v73, %v75
    %v108 = vmul.f32 %v74, %v76
    %v109 = vsub.f32 %v105, %v107
    %v110 = vsub.f32 %v106, %v108
    %v111 = vand.u32 2147483647, %v73
    %v112 = vand.u32 2147483647, %v74
    %v113 = vsub.f32 0.0, %v111
    %v114 = vsub.f32 0.0, %v112
    %v115 = vmul.f32 %v113, 1.442695
    %v116 = vpow.pop %v115
    %v117 = vmul.f32 %v114, 1.442695
    %v118 = vpow.pop %v117
    %v119 = vadd.f32 %v116, 1.0
    %v120 = vadd.f32 %v118, 1.0
    %v121 = vlog2.pop %v119
    %v122 = vmul.f32 %v121, 0.6931472
    %v123 = vlog2.pop %v120
    %v124 = vmul.f32 %v123, 0.6931472
    %v125 = vadd.f32 %v109, %v122
    %v126 = vadd.f32 %v110, %v124
    %v127 = vld [vmem:[#allocation2] sm:$0xff]
    %v128 = vld [vmem:[#allocation2 + $0x8] sm:$0xff]
    %v129 = vld [vmem:[#allocation2 + $0x10] sm:$0xff]
    %v130 = vld [vmem:[#allocation2 + $0x18] sm:$0xff]
    %v131 = vld [vmem:[#allocation2 + $0x20] sm:$0xff]
    %v132 = vld [vmem:[#allocation2 + $0x28] sm:$0xff]
    %v133 = vld [vmem:[#allocation2 + $0x30] sm:$0xff]
    %v134 = vld [vmem:[#allocation2 + $0x38] sm:$0xff]
    %v135 = vld [vmem:[#allocation2 + $0x40] sm:$0xff]
    %v136 = vld [vmem:[#allocation2 + $0x48] sm:$0xff]
    %v137 = vld [vmem:[#allocation3] sm:$0xff]
    %v138 = vld [vmem:[#allocation3 + $0x8] sm:$0xff]
    %v139 = vld [vmem:[#allocation3 + $0x10] sm:$0xff]
    %v140 = vld [vmem:[#allocation3 + $0x18] sm:$0xff]
    %v141 = vld [vmem:[#allocation3 + $0x20] sm:$0xff]
    %v142 = vld [vmem:[#allocation3 + $0x28] sm:$0xff]
    %v143 = vld [vmem:[#allocation3 + $0x30] sm:$0xff]
    %v144 = vld [vmem:[#allocation3 + $0x38] sm:$0xff]
    %v145 = vld [vmem:[#allocation3 + $0x40] sm:$0xff]
    %v146 = vld [vmem:[#allocation3 + $0x48] sm:$0xff]
    %v147 = vld [vmem:[#allocation3 + $0x50] sm:$0xff]
    %v148 = vld [vmem:[#allocation3 + $0x58] sm:$0xff]
    %v149 = vld [vmem:[#allocation3 + $0x60] sm:$0xff]
    %v150 = vld [vmem:[#allocation3 + $0x68] sm:$0xff]
    %v151 = vld [vmem:[#allocation3 + $0x70] sm:$0xff]
    %v152 = vld [vmem:[#allocation3 + $0x78] sm:$0xff]
    %153 = vmatprep.subr.mxu0 0.0
    %154 = vmatpush1.msra.mxu0 %v137
    %155 = vmatprep.subr.mxu0 0.0
    %156 = vmatpush1.msra.mxu0 %v138
    %157 = vmatprep.subr.mxu0 0.0
    %158 = vmatpush1.msra.mxu0 %v139
    %159 = vmatprep.subr.mxu0 0.0
    %160 = vmatpush1.msra.mxu0 %v140
    %161 = vmatprep.subr.mxu0 0.0
    %162 = vmatpush1.msra.mxu0 %v141
    %163 = vmatprep.subr.mxu0 0.0
    %164 = vmatpush1.msra.mxu0 %v142
    %165 = vmatprep.subr.mxu0 0.0
    %166 = vmatpush1.msra.mxu0 %v143
    %167 = vmatprep.subr.mxu0 0.0
    %168 = vmatpush1.msra.mxu0 %v144
    %169 = vmatprep.subr.mxu0 0.0
    %170 = vmatpush1.msra.mxu0 %v145
    %171 = vmatprep.subr.mxu0 0.0
    %172 = vmatpush1.msra.mxu0 %v146
    %173 = vmatprep.subr.mxu0 0.0
    %174 = vmatpush1.msra.mxu0 %v147
    %175 = vmatprep.subr.mxu0 0.0
    %176 = vmatpush1.msra.mxu0 %v148
    %177 = vmatprep.subr.mxu0 0.0
    %178 = vmatpush1.msra.mxu0 %v149
    %179 = vmatprep.subr.mxu0 0.0
    %180 = vmatpush1.msra.mxu0 %v150
    %181 = vmatprep.subr.mxu0 0.0
    %182 = vmatpush1.msra.mxu0 %v151
    %183 = vmatprep.subr.mxu0 0.0
    %184 = vmatpush1.msra.mxu0 %v152
    %185 = vmatprep.subr.mxu0 0.0
    %186 = vmatpush1.msra.mxu0 0.0
    %187 = vmatprep.subr.mxu0 0.0
    %188 = vmatpush1.msra.mxu0 0.0
    %189 = vmatprep.subr.mxu0 0.0
    %190 = vmatpush1.msra.mxu0 0.0
    %191 = vmatprep.subr.mxu0 0.0
    %192 = vmatpush1.msra.mxu0 0.0
    %193 = vmatprep.subr.mxu0 0.0
    %194 = vmatpush1.msra.mxu0 0.0
    %195 = vmatprep.subr.mxu0 0.0
    %196 = vmatpush1.msra.mxu0 0.0
    %197 = vmatprep.subr.mxu0 0.0
    %198 = vmatpush1.msra.mxu0 0.0
    %199 = vmatprep.subr.mxu0 0.0
    %200 = vmatpush1.msra.mxu0 0.0
    %201 = vmatprep.subr.mxu0 0.0
    %202 = vmatpush1.msra.mxu0 0.0
    %203 = vmatprep.subr.mxu0 0.0
    %204 = vmatpush1.msra.mxu0 0.0
    %205 = vmatprep.subr.mxu0 0.0
    %206 = vmatpush1.msra.mxu0 0.0
    %207 = vmatprep.subr.mxu0 0.0
    %208 = vmatpush1.msra.mxu0 0.0
    %209 = vmatprep.subr.mxu0 0.0
    %210 = vmatpush1.msra.mxu0 0.0
    %211 = vmatprep.subr.mxu0 0.0
    %212 = vmatpush1.msra.mxu0 0.0
    %213 = vmatprep.subr.mxu0 0.0
    %214 = vmatpush1.msra.mxu0 0.0
    %215 = vmatprep.subr.mxu0 0.0
    %216 = vmatpush1.msra.mxu0 0.0
    %217 = vmatprep.mubr.f32.mxu0 0.0
    %218 = vmatmul.mubr.f32.gmra.mrb[0].mxu0 %v127
    %v219 = vpop.f32.mrb[0].mxu0
    %v220 = vadd.f32 0.0, %v219
    %v221 = vpop.f32.mrb[0].mxu0
    %222 = vmatprep.mubr.f32.mxu0 0.0
    %223 = vmatmul.mubr.f32.gmra.mrb[0].mxu0 %v128
    %v224 = vpop.f32.mrb[0].mxu0
    %v225 = vadd.f32 0.0, %v224
    %v226 = vpop.f32.mrb[0].mxu0
    %227 = vmatprep.mubr.f32.mxu0 0.0
    %228 = vmatmul.mubr.f32.gmra.mrb[0].mxu0 %v129
    %v229 = vpop.f32.mrb[0].mxu0
    %v230 = vadd.f32 0.0, %v229
    %v231 = vpop.f32.mrb[0].mxu0
    %232 = vmatprep.mubr.f32.mxu0 0.0
    %233 = vmatmul.mubr.f32.gmra.mrb[0].mxu0 %v130
    %v234 = vpop.f32.mrb[0].mxu0
    %v235 = vadd.f32 0.0, %v234
    %v236 = vpop.f32.mrb[0].mxu0
    %237 = vmatprep.mubr.f32.mxu0 0.0
    %238 = vmatmul.mubr.f32.gmra.mrb[0].mxu0 %v131
    %v239 = vpop.f32.mrb[0].mxu0
    %v240 = vadd.f32 0.0, %v239
    %v241 = vpop.f32.mrb[0].mxu0
    %242 = vmatprep.mubr.f32.mxu0 0.0
    %243 = vmatmul.mubr.f32.gmra.mrb[0].mxu0 %v132
    %v244 = vpop.f32.mrb[0].mxu0
    %v245 = vadd.f32 0.0, %v244
    %v246 = vpop.f32.mrb[0].mxu0
    %247 = vmatprep.mubr.f32.mxu0 0.0
    %248 = vmatmul.mubr.f32.gmra.mrb[0].mxu0 %v133
    %v249 = vpop.f32.mrb[0].mxu0
    %v250 = vadd.f32 0.0, %v249
    %v251 = vpop.f32.mrb[0].mxu0
    %252 = vmatprep.mubr.f32.mxu0 0.0
    %253 = vmatmul.mubr.f32.gmra.mrb[0].mxu0 %v134
    %v254 = vpop.f32.mrb[0].mxu0
    %v255 = vadd.f32 0.0, %v254
    %v256 = vpop.f32.mrb[0].mxu0
    %257 = vmatprep.mubr.f32.mxu0 0.0
    %258 = vmatmul.mubr.f32.gmra.mrb[0].mxu0 %v135
    %v259 = vpop.f32.mrb[0].mxu0
    %v260 = vadd.f32 0.0, %v259
    %v261 = vpop.f32.mrb[0].mxu0
    %262 = vmatprep.mubr.f32.mxu0 0.0
    %263 = vmatmul.mubr.f32.gmra.mrb[0].mxu0 %v136
    %v264 = vpop.f32.mrb[0].mxu0
    %v265 = vadd.f32 0.0, %v264
    %v266 = vpop.f32.mrb[0].mxu0
    %267 = vdwg.mxu0
    %v268 = vld [vmem:[#allocation6] sm:$0xff]
    %v269 = vld [vmem:[#allocation6 + $0x8] sm:$0xff]
    %v270 = vld [vmem:[#allocation6 + $0x10] sm:$0xff]
    %v271 = vld [vmem:[#allocation6 + $0x18] sm:$0xff]
    %v272 = vld [vmem:[#allocation6 + $0x20] sm:$0xff]
    %v273 = vld [vmem:[#allocation6 + $0x28] sm:$0xff]
    %v274 = vld [vmem:[#allocation6 + $0x30] sm:$0xff]
    %v275 = vld [vmem:[#allocation6 + $0x38] sm:$0xff]
    %v276 = vld [vmem:[#allocation6 + $0x40] sm:$0xff]
    %v277 = vld [vmem:[#allocation6 + $0x48] sm:$0xff]
    %vm278 = vcmask 654336
    %v280 = vsel %vm278, %v268, 0
    %v283 = vsel %vm278, %v269, 0
    %v286 = vsel %vm278, %v270, 0
    %v289 = vsel %vm278, %v271, 0
    %v292 = vsel %vm278, %v272, 0
    %v295 = vsel %vm278, %v273, 0
    %v298 = vsel %vm278, %v274, 0
    %v301 = vsel %vm278, %v275, 0
    %v304 = vsel %vm278, %v276, 0
    %v307 = vsel %vm278, %v277, 0
    %309 = vmatprep.subr.mxu0 0.0
    %310 = vmatpush1.msra.mxu0 %v220
    %311 = vmatprep.subr.mxu0 0.0
    %312 = vmatpush1.msra.mxu0 %v225
    %313 = vmatprep.subr.mxu0 0.0
    %314 = vmatpush1.msra.mxu0 %v230
    %315 = vmatprep.subr.mxu0 0.0
    %316 = vmatpush1.msra.mxu0 %v235
    %317 = vmatprep.subr.mxu0 0.0
    %318 = vmatpush1.msra.mxu0 %v240
    %319 = vmatprep.subr.mxu0 0.0
    %320 = vmatpush1.msra.mxu0 %v245
    %321 = vmatprep.subr.mxu0 0.0
    %322 = vmatpush1.msra.mxu0 %v250
    %323 = vmatprep.subr.mxu0 0.0
    %324 = vmatpush1.msra.mxu0 %v255
    %325 = vmatprep.subr.mxu0 0.0
    %326 = vmatpush1.msra.mxu0 %v260
    %327 = vmatprep.subr.mxu0 0.0
    %328 = vmatpush1.msra.mxu0 %v265
    %329 = vmatprep.subr.mxu0 0.0
    %330 = vmatpush1.msra.mxu0 0.0
    %331 = vmatprep.subr.mxu0 0.0
    %332 = vmatpush1.msra.mxu0 0.0
    %333 = vmatprep.subr.mxu0 0.0
    %334 = vmatpush1.msra.mxu0 0.0
    %335 = vmatprep.subr.mxu0 0.0
    %336 = vmatpush1.msra.mxu0 0.0
    %337 = vmatprep.subr.mxu0 0.0
    %338 = vmatpush1.msra.mxu0 0.0
    %339 = vmatprep.subr.mxu0 0.0
    %340 = vmatpush1.msra.mxu0 0.0
    %341 = vmatprep.subr.mxu0 0.0
    %342 = vmatpush1.msra.mxu0 0.0
    %343 = vmatprep.subr.mxu0 0.0
    %344 = vmatpush1.msra.mxu0 0.0
    %345 = vmatprep.subr.mxu0 0.0
    %346 = vmatpush1.msra.mxu0 0.0
    %347 = vmatprep.subr.mxu0 0.0
    %348 = vmatpush1.msra.mxu0 0.0
    %349 = vmatprep.subr.mxu0 0.0
    %350 = vmatpush1.msra.mxu0 0.0
    %351 = vmatprep.subr.mxu0 0.0
    %352 = vmatpush1.msra.mxu0 0.0
    %353 = vmatprep.subr.mxu0 0.0
    %354 = vmatpush1.msra.mxu0 0.0
    %355 = vmatprep.subr.mxu0 0.0
    %356 = vmatpush1.msra.mxu0 0.0
    %357 = vmatprep.subr.mxu0 0.0
    %358 = vmatpush1.msra.mxu0 0.0
    %359 = vmatprep.subr.mxu0 0.0
    %360 = vmatpush1.msra.mxu0 0.0
    %361 = vmatprep.subr.mxu0 0.0
    %362 = vmatpush1.msra.mxu0 0.0
    %363 = vmatprep.subr.mxu0 0.0
    %364 = vmatpush1.msra.mxu0 0.0
    %365 = vmatprep.subr.mxu0 0.0
    %366 = vmatpush1.msra.mxu0 0.0
    %367 = vmatprep.subr.mxu0 0.0
    %368 = vmatpush1.msra.mxu0 0.0
    %369 = vmatprep.subr.mxu0 0.0
    %370 = vmatpush1.msra.mxu0 0.0
    %371 = vmatprep.subr.mxu0 0.0
    %372 = vmatpush1.msra.mxu0 0.0
    %373 = vmatprep.mubr.f32.mxu0 0.0
    %374 = vmatmul.mubr.f32.gmra.mrb[0].mxu0 %v280
    %v375 = vpop.f32.mrb[0].mxu0
    %v376 = vadd.f32 0.0, %v375
    %v377 = vpop.f32.mrb[0].mxu0
    %378 = vmatprep.mubr.f32.mxu0 0.0
    %379 = vmatmul.mubr.f32.gmra.mrb[0].mxu0 %v283
    %v380 = vpop.f32.mrb[0].mxu0
    %v381 = vadd.f32 0.0, %v380
    %v382 = vpop.f32.mrb[0].mxu0
    %383 = vmatprep.mubr.f32.mxu0 0.0
    %384 = vmatmul.mubr.f32.gmra.mrb[0].mxu0 %v286
    %v385 = vpop.f32.mrb[0].mxu0
    %v386 = vadd.f32 0.0, %v385
    %v387 = vpop.f32.mrb[0].mxu0
    %388 = vmatprep.mubr.f32.mxu0 0.0
    %389 = vmatmul.mubr.f32.gmra.mrb[0].mxu0 %v289
    %v390 = vpop.f32.mrb[0].mxu0
    %v391 = vadd.f32 0.0, %v390
    %v392 = vpop.f32.mrb[0].mxu0
    %393 = vmatprep.mubr.f32.mxu0 0.0
    %394 = vmatmul.mubr.f32.gmra.mrb[0].mxu0 %v292
    %v395 = vpop.f32.mrb[0].mxu0
    %v396 = vadd.f32 0.0, %v395
    %v397 = vpop.f32.mrb[0].mxu0
    %398 = vmatprep.mubr.f32.mxu0 0.0
    %399 = vmatmul.mubr.f32.gmra.mrb[0].mxu0 %v295
    %v400 = vpop.f32.mrb[0].mxu0
    %v401 = vadd.f32 0.0, %v400
    %v402 = vpop.f32.mrb[0].mxu0
    %403 = vmatprep.mubr.f32.mxu0 0.0
    %404 = vmatmul.mubr.f32.gmra.mrb[0].mxu0 %v298
    %v405 = vpop.f32.mrb[0].mxu0
    %v406 = vadd.f32 0.0, %v405
    %v407 = vpop.f32.mrb[0].mxu0
    %408 = vmatprep.mubr.f32.mxu0 0.0
    %409 = vmatmul.mubr.f32.gmra.mrb[0].mxu0 %v301
    %v410 = vpop.f32.mrb[0].mxu0
    %v411 = vadd.f32 0.0, %v410
    %v412 = vpop.f32.mrb[0].mxu0
    %413 = vmatprep.mubr.f32.mxu0 0.0
    %414 = vmatmul.mubr.f32.gmra.mrb[0].mxu0 %v304
    %v415 = vpop.f32.mrb[0].mxu0
    %v416 = vadd.f32 0.0, %v415
    %v417 = vpop.f32.mrb[0].mxu0
    %418 = vmatprep.mubr.f32.mxu0 0.0
    %419 = vmatmul.mubr.f32.gmra.mrb[0].mxu0 %v307
    %v420 = vpop.f32.mrb[0].mxu0
    %v421 = vadd.f32 0.0, %v420
    %v422 = vpop.f32.mrb[0].mxu0
    %423 = vdwg.mxu0
    %v424 = vmul.f32 %v376, %v376
    %v425 = vmul.f32 %v381, %v381
    %v426 = vmul.f32 %v386, %v386
    %v427 = vmul.f32 %v391, %v391
    %v428 = vmul.f32 %v376, %v386
    %v429 = vmul.f32 %v381, %v391
    %v430 = vmul.f32 %v428, 2.0
    %v431 = vmul.f32 %v429, 2.0
    %v432 = vadd.f32 %v430, 0.0001
    %v433 = vadd.f32 %v431, 0.0001
    %v434 = vsub.f32 %v416, %v428
    %v435 = vsub.f32 %v421, %v429
    %v436 = vmul.f32 %v434, 2.0
    %v437 = vmul.f32 %v435, 2.0
    %v438 = vadd.f32 %v436, 0.0009
    %v439 = vadd.f32 %v437, 0.0009
    %v440 = vmul.f32 %v432, %v438
    %v441 = vmul.f32 %v433, %v439
    %v442 = vadd.f32 %v424, %v426
    %v443 = vadd.f32 %v425, %v427
    %v444 = vadd.f32 %v442, 0.0001
    %v445 = vadd.f32 %v443, 0.0001
    %v446 = vsub.f32 %v396, %v424
    %v447 = vsub.f32 %v401, %v425
    %v448 = vsub.f32 %v406, %v426
    %v449 = vsub.f32 %v411, %v427
    %v450 = vadd.f32 %v446, %v448
    %v451 = vadd.f32 %v447, %v449
    %v452 = vadd.f32 %v450, 0.0009
    %v453 = vadd.f32 %v451, 0.0009
    %v454 = vmul.f32 %v444, %v452
    %v455 = vmul.f32 %v445, %v453
    %v456 = vrcp.pop %v454
    %v457 = vrcp.pop %v455
    %v458 = vmul.f32 %v454, %v456
    %v459 = vmul.f32 %v455, %v457
    %v460 = vsub.f32 2.0, %v458
    %v461 = vsub.f32 2.0, %v459
    %v462 = vmul.f32 %v456, %v460
    %v463 = vmul.f32 %v457, %v461
    %v464 = vmul.f32 %v440, %v462
    %v465 = vmul.f32 %v441, %v463
    %v466 = vadd.f32 %v93, %v94
    %v467 = vrot.slane %v466, 4
    %v468 = vadd.f32 %v466, %v467
    %v469 = vrot.slane %v468, 2
    %v470 = vadd.f32 %v468, %v469
    %v471 = vrot.slane %v470, 1
    %v472 = vadd.f32 %v470, %v471
    %v473 = vadd.f32 %v89, %v91
    %v474 = vadd.f32 %v90, %v92
    %v475 = vadd.f32 %v473, %v474
    %v476 = vrot.slane %v475, 4
    %v477 = vadd.f32 %v475, %v476
    %v478 = vrot.slane %v477, 2
    %v479 = vadd.f32 %v477, %v478
    %v480 = vrot.slane %v479, 1
    %v481 = vadd.f32 %v479, %v480
    %v482 = vadd.f32 %v464, %v465
    %v483 = vrot.slane %v482, 4
    %v484 = vadd.f32 %v482, %v483
    %v485 = vrot.slane %v484, 2
    %v486 = vadd.f32 %v484, %v485
    %v487 = vrot.slane %v486, 1
    %v488 = vadd.f32 %v486, %v487
    %v489 = vadd.f32 %v125, %v126
    %v490 = vrot.slane %v489, 4
    %v491 = vadd.f32 %v489, %v490
    %v492 = vrot.slane %v491, 2
    %v493 = vadd.f32 %v491, %v492
    %v494 = vrot.slane %v493, 1
    %v495 = vadd.f32 %v493, %v494
    %496 = vst [vmem:[#allocation11] sm:$0x1] %v472
    %497 = vst [vmem:[#allocation11 + $0x1] sm:$0x1] %v481
    %498 = vst [vmem:[#allocation11 + $0x2] sm:$0x1] %v488
    %499 = vst [vmem:[#allocation11 + $0x3] sm:$0x1] %v495
    // Predicated region
    $region34: #{tpu_custom_call.1} parent=1 // pred_check
      _
    $region35: #{tpu_custom_call.1} parent=1 // pred_check_branch
      %501 = sbr.rel (0) target = $region37
    $region36: #{tpu_custom_call.1} parent=1 // pred_region
      %s503 = ssub.s32 64, 64
      %504 = vsyncadd [#allocation5], %s503
      %s505 = sshll.u32 [#allocation11], 4
      %s506 = int_to_ptr.vmem [resolvable:$true] %s505
      %511 = dma.vmem_to_hbm [thread:$0]  %s506, 64, %s4, [#allocation5], 16, 16, 1
    $region37: #{tpu_custom_call.1} parent=1 // pred_fallthru
      _
    // Predicated region
    $region38: #{tpu_custom_call.1} parent=1 // pred_check
      _
    $region39: #{tpu_custom_call.1} parent=1 // pred_check_branch
      %513 = sbr.rel (0) target = $region41
    $region40: #{tpu_custom_call.1} parent=1 // pred_region
      %514 = dma.done [#allocation5], 64
    $region41: #{tpu_custom_call.1} parent=1 // pred_fallthru
      _
    %515 = vsyncpa [#allocation4], 1
    %516 = vsyncpa [#allocation7], 1
    %517 = vsyncpa [#allocation10], 1
    %518 = vsyncpa [#allocation5], 1

</llo_original>
